<compile_context>
chip_gen: v6e
topology: v6e:2x2x1
jax: 0.10.0
libtpu: 0.0.40
codegen_flags: <defaults>
</compile_context>

<pallas_src>
import jax
import jax.numpy as jnp
from jax.experimental import pallas as pl
from jax.experimental.pallas import tpu as pltpu


def _round_up(v, m):
    return (v + m - 1) // m * m


def _krr_rbf_kernel(x_ref, xfit_ref, dual_ref, out_ref, acc_ref):
    j = pl.program_id(1)

    @pl.when(j == 0)
    def _():
        acc_ref[...] = jnp.zeros_like(acc_ref)

    # Augmented inner product == -g||x||^2 - g||y||^2 + 2g x.y  (all inside the MXU).
    # Contract feature dim (1) of both operands -> no materialized transpose.
    e = jax.lax.dot_general(
        x_ref[...], xfit_ref[...],
        dimension_numbers=(((1,), (1,)), ((), ())),
        preferred_element_type=jnp.float32,
    )  # (tn, tm)

    k = jnp.exp(e)  # EUP; exponent <= ~0 (can round to tiny >0 when x ~= y, like ref)

    # Partial K @ dual_coef_ for this X_fit tile; second matmul runs in the
    # storage dtype (f32 by default, bf16 on the opt-in fast path).
    acc_ref[...] += jnp.dot(k.astype(dual_ref.dtype), dual_ref[...],
                            preferred_element_type=jnp.float32)

    @pl.when(j == pl.num_programs(1) - 1)
    def _():
        out_ref[...] = acc_ref[...].astype(out_ref.dtype)


def kernel_ridge_predict(x, x_fit, dual_coef, *, gamma=None, tn=None, tm=None,
                         use_bf16=False):
    """Pallas implementation of KernelRidgeModel.forward with an RBF kernel.

    x         : (N, D)
    x_fit     : (M, D)
    dual_coef : (M, T)
    use_bf16  : opt-in bf16 storage + MXU path (~1e-3 relative error)
    returns   : (N, T) float32
    """
    n, d = x.shape
    m, d2 = x_fit.shape
    assert d == d2
    m2, t = dual_coef.shape
    assert m == m2
    if gamma is None:
        gamma = 1.0 / d          # sklearn's RBF default: gamma = 1 / n_features
    gamma = float(gamma)

    f32 = jnp.float32
    store_dt = jnp.bfloat16 if use_bf16 else f32
    store_bytes = 2 if use_bf16 else 4

    # ---- padded / augmented sizes ---------------------------------------------------
    d_aug = d + 2                          # [sqrt(2g)x, 1, -g||x||^2] augmentation
    d_pad = _round_up(d_aug, 128)          # features -> lane axis / MXU depth
    t_pad = _round_up(t, 128)              # targets  -> lane-dense output & accumulator

    # ---- tile selection --------------------------------------------------------------
    if tn is None:
        tn = 1024 if d_pad <= 256 else 512
    if tm is None:
        tm = 1024

    # tn: as large as possible (fewer x_fit/dual re-stream passes), but ensure the
    # "parallel" i axis has >= 2 tiles when N is big enough so v7x's two TCs both work.
    if n <= 128:
        tn = max(8, _round_up(n, 8))
    else:
        tn = min(tn, _round_up(n, 128))
        if n >= 256 and _round_up(n, tn) // tn < 2:
            tn = max(128, _round_up((n + 1) // 2, 8))   # half-split, minimal waste

    # tm: multiples of 128 chosen to minimize M padding waste (padding columns cost
    # full MXU + EUP work); tiny M just rounds to the 8-sublane grain.
    if m <= 128:
        tm = max(8, _round_up(m, 8))
    elif m <= tm:
        tm = _round_up(m, 128)
    else:
        cands = range(128, tm + 1, 128)
        tm = min(cands, key=lambda c: (_round_up(m, c) - m, -c))

    # ---- VMEM budget (double-buffered blocks + intermediates + accumulator) ----------
    def _vmem_bytes(tn_, tm_):
        x_blk = tn_ * d_pad * store_bytes
        f_blk = tm_ * d_pad * store_bytes
        d_blk = tm_ * t_pad * store_bytes
        o_blk = tn_ * t_pad * 4
        acc = tn_ * t_pad * 4
        inter = 2 * tn_ * tm_ * 4          # xy / k f32 intermediates
        return 2 * (x_blk + f_blk + d_blk + o_blk) + acc + inter

    budget = 12 << 20                      # safely under v5e 16 MiB / v7x 32 MiB scoped
    while _vmem_bytes(tn, tm) > budget and tm > 128:
        tm = max(128, tm // 2)
    while _vmem_bytes(tn, tm) > budget and tn > 128:
        tn = max(128, tn // 2)

    n_pad = _round_up(n, tn)
    m_pad = _round_up(m, tm)

    compiler_kwargs = dict(dimension_semantics=("parallel", "arbitrary"))
    fp = _vmem_bytes(tn, tm)
    if fp > budget:
        # Huge D even at minimal tiles: raise the scoped VMEM limit explicitly.
        compiler_kwargs["vmem_limit_bytes"] = min(int(fp * 1.25) + (2 << 20), 128 << 20)

    # ---- wrapper-side padding + feature augmentation (all zero padding is inert) -----
    x32 = x.astype(f32)
    xf32 = x_fit.astype(f32)
    s2g = jnp.sqrt(jnp.asarray(2.0 * gamma, f32))
    gx2 = (-gamma) * jnp.sum(x32 * x32, axis=-1)        # (n,)
    gy2 = (-gamma) * jnp.sum(xf32 * xf32, axis=-1)      # (m,)

    xp = jnp.zeros((n_pad, d_pad), store_dt)
    xp = xp.at[:n, :d].set((s2g * x32).astype(store_dt))
    xp = xp.at[:n, d].set(jnp.ones((n,), store_dt))
    xp = xp.at[:n, d + 1].set(gx2.astype(store_dt))

    xf = jnp.zeros((m_pad, d_pad), store_dt)
    xf = xf.at[:m, :d].set((s2g * xf32).astype(store_dt))
    xf = xf.at[:m, d].set(gy2.astype(store_dt))
    xf = xf.at[:m, d + 1].set(jnp.ones((m,), store_dt))

    # Padded X_fit rows are neutralized by zero dual_coef rows (exp(0)=1 times 0).
    dc = jnp.zeros((m_pad, t_pad), store_dt).at[:m, :t].set(dual_coef.astype(store_dt))

    out = pl.pallas_call(
        _krr_rbf_kernel,
        out_shape=jax.ShapeDtypeStruct((n_pad, t_pad), f32),
        grid_spec=pltpu.PrefetchScalarGridSpec(
            num_scalar_prefetch=0,
            grid=(n_pad // tn, m_pad // tm),
            in_specs=[
                pl.BlockSpec((tn, d_pad), lambda i, j: (i, 0)),   # augmented x rows
                pl.BlockSpec((tm, d_pad), lambda i, j: (j, 0)),   # augmented X_fit rows
                pl.BlockSpec((tm, t_pad), lambda i, j: (j, 0)),   # dual_coef rows
            ],
            out_specs=pl.BlockSpec((tn, t_pad), lambda i, j: (i, 0)),
            scratch_shapes=[pltpu.VMEM((tn, t_pad), f32)],
        ),
        compiler_params=pltpu.CompilerParams(**compiler_kwargs),
    )(xp, xf, dc)

    return out[:n, :t]


def _reference(x, x_fit, dual_coef, gamma):
    sqd = (
        jnp.sum(x * x, axis=-1, keepdims=True)
        + jnp.sum(x_fit * x_fit, axis=-1)[None, :]
        - 2.0 * (x @ x_fit.T)
    )
    k = jnp.exp(-gamma * sqd)
    return k @ dual_coef


if __name__ == "__main__":
    key = jax.random.PRNGKey(0)

    # --- small test matching the module's typical fitted shapes (T=1 target) ---------
    N, M, D, T = 16, 32, 8, 1
    kx, kf, kd = jax.random.split(key, 3)
    x = jax.random.normal(kx, (N, D), dtype=jnp.float32)
    x_fit = jax.random.normal(kf, (M, D), dtype=jnp.float32)       # stored at __init__
    dual_coef = jax.random.normal(kd, (M, T), dtype=jnp.float32)   # stored at __init__
    gamma = 0.5                                                    # best_params override

    out = jax.block_until_ready(kernel_ridge_predict(x, x_fit, dual_coef, gamma=gamma))
    ref = _reference(x, x_fit, dual_coef, gamma)
    assert out.shape == (N, T)
    assert jnp.allclose(out, ref, atol=1e-5, rtol=1e-5)

    # opt-in bf16 fast path (relaxed tolerance, documented ~1e-3 relative)
    out_bf = jax.block_until_ready(
        kernel_ridge_predict(x, x_fit, dual_coef, gamma=gamma, use_bf16=True))
    assert jnp.allclose(out_bf, ref, atol=3e-2, rtol=3e-2)

    # --- second test exercising multi-tile grid, megacore split and padding logic ----
    N2, M2, D2, T2 = 300, 1500, 20, 3
    k1, k2, k3 = jax.random.split(jax.random.PRNGKey(1), 3)
    x2 = jax.random.normal(k1, (N2, D2), dtype=jnp.float32)
    xf2 = jax.random.normal(k2, (M2, D2), dtype=jnp.float32)
    dc2 = jax.random.normal(k3, (M2, T2), dtype=jnp.float32) * 0.1

    out2 = jax.block_until_ready(kernel_ridge_predict(x2, xf2, dc2, gamma=0.05))
    ref2 = _reference(x2, xf2, dc2, 0.05)
    assert out2.shape == (N2, T2)
    assert jnp.allclose(out2, ref2, atol=1e-4, rtol=1e-4)

    # TODO(synk): only the RBF kernel branch of get_kernel() is implemented;
    # other kernel choices (linear/poly/laplacian) would need their own kernel body.
    print("KERNEL_OK")
</pallas_src>

<mosaic_0001>
module attributes {stable_mosaic.version = 11 : i64} {
  func.func @_krr_rbf_kernel(%arg0: i32, %arg1: i32, %arg2: memref<16x128xf32, #tpu.memory_space<vmem>>, %arg3: memref<32x128xf32, #tpu.memory_space<vmem>>, %arg4: memref<32x128xf32, #tpu.memory_space<vmem>>, %arg5: memref<16x128xf32, #tpu.memory_space<vmem>>, %arg6: memref<16x128xf32, #tpu.memory_space<vmem>>) attributes {dimension_semantics = [#tpu.dimension_semantics<parallel>, #tpu.dimension_semantics<arbitrary>], iteration_bounds = array<i64: 1, 1>, scalar_prefetch = 0 : i64, scratch_operands = 1 : i64, tpu.core_type = #tpu.core_type<tc>, window_params = [{transform_indices = @transform_0, window_bounds = array<i64: 16, 128>}, {transform_indices = @transform_1, window_bounds = array<i64: 32, 128>}, {transform_indices = @transform_2, window_bounds = array<i64: 32, 128>}, {transform_indices = @transform_3, window_bounds = array<i64: 16, 128>}]} {
    %c0_i32 = arith.constant 0 : i32
    %0 = arith.cmpi eq, %arg1, %c0_i32 : i32
    %1 = arith.extui %0 : i1 to i32
    %c0_i32_0 = arith.constant 0 : i32
    %2 = arith.cmpi ne, %1, %c0_i32_0 : i32
    scf.if %2 {
      %cst_13 = arith.constant 0.000000e+00 : f32
      %15 = vector.broadcast %cst_13 : f32 to vector<16x128xf32>
      %c0_14 = arith.constant 0 : index
      %c0_15 = arith.constant 0 : index
      %16 = vector.load %arg6[%c0_14, %c0_15] : memref<16x128xf32, #tpu.memory_space<vmem>>, vector<16x128xf32>
      tpu.vector_store %arg6[%c0_14, %c0_15], %15 {strides = array<i32>} : memref<16x128xf32, #tpu.memory_space<vmem>>, vector<16x128xf32>,
    } else {
    }
    %c0 = arith.constant 0 : index
    %c0_1 = arith.constant 0 : index
    %3 = vector.load %arg2[%c0, %c0_1] : memref<16x128xf32, #tpu.memory_space<vmem>>, vector<16x128xf32>
    %c0_2 = arith.constant 0 : index
    %c0_3 = arith.constant 0 : index
    %4 = vector.load %arg3[%c0_2, %c0_3] : memref<32x128xf32, #tpu.memory_space<vmem>>, vector<32x128xf32>
    %cst = arith.constant dense<0.000000e+00> : vector<16x32xf32>
    %5 = tpu.matmul %3, %4, %cst {dimension_numbers = #tpu.dot_dimension_numbers<[1], [1], [0], [0], [0, 0, 1, 0], [], []>} : vector<16x128xf32>, vector<32x128xf32>, vector<16x32xf32> -> vector<16x32xf32>
    %6 = math.exp %5 : vector<16x32xf32>
    %c0_4 = arith.constant 0 : index
    %c0_5 = arith.constant 0 : index
    %7 = vector.load %arg6[%c0_4, %c0_5] : memref<16x128xf32, #tpu.memory_space<vmem>>, vector<16x128xf32>
    %c0_6 = arith.constant 0 : index
    %c0_7 = arith.constant 0 : index
    %8 = vector.load %arg4[%c0_6, %c0_7] : memref<32x128xf32, #tpu.memory_space<vmem>>, vector<32x128xf32>
    %cst_8 = arith.constant dense<0.000000e+00> : vector<16x128xf32>
    %9 = tpu.matmul %6, %8, %cst_8 {dimension_numbers = #tpu.dot_dimension_numbers<[1], [0], [0], [1], [0, 0, 1, 1], [], []>} : vector<16x32xf32>, vector<32x128xf32>, vector<16x128xf32> -> vector<16x128xf32>
    %10 = arith.addf %7, %9 : vector<16x128xf32>
    %c0_9 = arith.constant 0 : index
    %c0_10 = arith.constant 0 : index
    %11 = vector.load %arg6[%c0_9, %c0_10] : memref<16x128xf32, #tpu.memory_space<vmem>>, vector<16x128xf32>
    tpu.vector_store %arg6[%c0_9, %c0_10], %10 {strides = array<i32>} : memref<16x128xf32, #tpu.memory_space<vmem>>, vector<16x128xf32>,
    %c0_i32_11 = arith.constant 0 : i32
    %12 = arith.cmpi eq, %arg1, %c0_i32_11 : i32
    %13 = arith.extui %12 : i1 to i32
    %c0_i32_12 = arith.constant 0 : i32
    %14 = arith.cmpi ne, %13, %c0_i32_12 : i32
    scf.if %14 {
      %c0_13 = arith.constant 0 : index
      %c0_14 = arith.constant 0 : index
      %15 = vector.load %arg6[%c0_13, %c0_14] : memref<16x128xf32, #tpu.memory_space<vmem>>, vector<16x128xf32>
      %c0_15 = arith.constant 0 : index
      %c0_16 = arith.constant 0 : index
      %16 = vector.load %arg5[%c0_15, %c0_16] : memref<16x128xf32, #tpu.memory_space<vmem>>, vector<16x128xf32>
      tpu.vector_store %arg5[%c0_15, %c0_16], %15 {strides = array<i32>} : memref<16x128xf32, #tpu.memory_space<vmem>>, vector<16x128xf32>,
    } else {
    }
    return
  }
  func.func @transform_0(%arg0: i32, %arg1: i32) -> (i32, i32) {
    %c0_i32 = arith.constant 0 : i32
    %c0_i32_0 = arith.constant 0 : i32
    return %arg0, %c0_i32 : i32, i32
  }
  func.func @transform_1(%arg0: i32, %arg1: i32) -> (i32, i32) {
    %c0_i32 = arith.constant 0 : i32
    %c0_i32_0 = arith.constant 0 : i32
    return %arg1, %c0_i32 : i32, i32
  }
  func.func @transform_2(%arg0: i32, %arg1: i32) -> (i32, i32) {
    %c0_i32 = arith.constant 0 : i32
    %c0_i32_0 = arith.constant 0 : i32
    return %arg1, %c0_i32 : i32, i32
  }
  func.func @transform_3(%arg0: i32, %arg1: i32) -> (i32, i32) {
    %c0_i32 = arith.constant 0 : i32
    %c0_i32_0 = arith.constant 0 : i32
    return %arg0, %c0_i32 : i32, i32
  }
}

</mosaic_0001>

<llo_original>
// kernel: tpu_custom_call.1
$region0: #{tpu_custom_call.1}
  #allocation0 [shape = 'u32[]', space=smem, size = 0x4, offset = 0x4, fixed_abs, tag = 'smem constant byte address 0x4 - core index']
  #allocation1 [shape = 'u32[144,128]{1,0:T(1,128)}', space=vmem, size = 0x12000, scoped, tag = 'internal scratch']
  #allocation2 [shape = 'f32[16,128]{1,0:T(8,128)}', space=vmem, size = 0x2000, scoped, tag = 'scratch operand']
  %s0 = inlined_call_operand.hbm [shape: f32[16,128], index: 0, kind: input, shape index: {}]
  %s1 = inlined_call_operand.hbm [shape: f32[32,128], index: 1, kind: input, shape index: {}]
  %s2 = inlined_call_operand.hbm [shape: f32[32,128], index: 2, kind: input, shape index: {}]
  %s3 = inlined_call_operand.hbm [shape: f32[16,128], index: 3, kind: output, shape index: {}]
  %s4 = sld [smem:[#allocation0]]
  $region42: #{tpu_custom_call.1} parent=0
    _
  %s6 = ssub.s32 1, %s4
  %s7 = scalar_select 0, %s6, %s4
  $region1: #{tpu_custom_call.1} parent=0
    #allocation3 [shape = 'u8[8192]{0}', space=vmem, size = 0x2000, scoped, tag = 'input window, operand 0, single buffered']
    #allocation4 [shape = 's32[1]{0}', space=sflag, size = 0x4, scoped, tag = 'scoped memory for tpu_custom_call.1']
    #allocation5 [shape = 's32[1]{0}', space=sflag, size = 0x4, scoped, tag = 'scoped memory for tpu_custom_call.1']
    #allocation6 [shape = 'u8[16384]{0}', space=vmem, size = 0x4000, scoped, tag = 'input window, operand 1, single buffered']
    #allocation7 [shape = 's32[1]{0}', space=sflag, size = 0x4, scoped, tag = 'scoped memory for tpu_custom_call.1']
    #allocation8 [shape = 'u8[16384]{0}', space=vmem, size = 0x4000, scoped, tag = 'input window, operand 2, single buffered']
    #allocation9 [shape = 'u8[8192]{0}', space=vmem, size = 0x2000, scoped, tag = 'output window, operand 0, single buffered']
    %8 = vsyncpa [#allocation4], 0
    %9 = vsyncpa [#allocation7], 0
    %10 = vsyncpa [#allocation5], 0
    // Predicated region
    $region2: #{tpu_custom_call.1} parent=1 // pred_check
      _
    $region3: #{tpu_custom_call.1} parent=1 // pred_check_branch
      %12 = sbr.rel (0) target = $region5
    $region4: #{tpu_custom_call.1} parent=1 // pred_region
      %s14 = ssub.s32 256, 256
      %15 = vsyncadd [#allocation4], %s14
      %s16 = sshll.u32 [#allocation3], 4
      %s17 = int_to_ptr.vmem [resolvable:$true] %s16
      %22 = dma.hbm_to_vmem [thread:$0]  %s0, 256, %s17, [#allocation4], 128, 128, 8
    $region5: #{tpu_custom_call.1} parent=1 // pred_fallthru
      _
    // Predicated region
    $region6: #{tpu_custom_call.1} parent=1 // pred_check
      _
    $region7: #{tpu_custom_call.1} parent=1 // pred_check_branch
      %24 = sbr.rel (0) target = $region9
    $region8: #{tpu_custom_call.1} parent=1 // pred_region
      %s26 = ssub.s32 512, 512
      %27 = vsyncadd [#allocation7], %s26
      %s28 = sshll.u32 [#allocation6], 4
      %s29 = int_to_ptr.vmem [resolvable:$true] %s28
      %34 = dma.hbm_to_vmem [thread:$0]  %s1, 512, %s29, [#allocation7], 128, 128, 8
    $region9: #{tpu_custom_call.1} parent=1 // pred_fallthru
      _
    // Predicated region
    $region10: #{tpu_custom_call.1} parent=1 // pred_check
      _
    $region11: #{tpu_custom_call.1} parent=1 // pred_check_branch
      %36 = sbr.rel (0) target = $region13
    $region12: #{tpu_custom_call.1} parent=1 // pred_region
      %s38 = ssub.s32 512, 512
      %39 = vsyncadd [#allocation7], %s38
      %s40 = sshll.u32 [#allocation8], 4
      %s41 = int_to_ptr.vmem [resolvable:$true] %s40
      %46 = dma.hbm_to_vmem [thread:$0]  %s2, 512, %s41, [#allocation7], 128, 128, 8
    $region13: #{tpu_custom_call.1} parent=1 // pred_fallthru
      _
    // Predicated region
    $region14: #{tpu_custom_call.1} parent=1 // pred_check
      _
    $region15: #{tpu_custom_call.1} parent=1 // pred_check_branch
      %48 = sbr.rel (0) target = $region17
    $region16: #{tpu_custom_call.1} parent=1 // pred_region
      %49 = dma.done [#allocation4], 256
    $region17: #{tpu_custom_call.1} parent=1 // pred_fallthru
      _
    // Predicated region
    $region18: #{tpu_custom_call.1} parent=1 // pred_check
      _
    $region19: #{tpu_custom_call.1} parent=1 // pred_check_branch
      %51 = sbr.rel (0) target = $region21
    $region20: #{tpu_custom_call.1} parent=1 // pred_region
      %52 = dma.done [#allocation7], 512
    $region21: #{tpu_custom_call.1} parent=1 // pred_fallthru
      _
    // Predicated region
    $region22: #{tpu_custom_call.1} parent=1 // pred_check
      _
    $region23: #{tpu_custom_call.1} parent=1 // pred_check_branch
      %54 = sbr.rel (0) target = $region25
    $region24: #{tpu_custom_call.1} parent=1 // pred_region
      %55 = dma.done [#allocation7], 512
    $region25: #{tpu_custom_call.1} parent=1 // pred_fallthru
      _
    %p56 = scmp.eq.s32.totalorder 0, 0
    // Predicated region
    $region26: #{tpu_custom_call.1} parent=1 // pred_check
      %p57 = pneg %p56
    $region27: #{tpu_custom_call.1} parent=1 // pred_check_branch
      %59 = sbr.rel (%p57) target = $region29
    $region28: #{tpu_custom_call.1} parent=1 // pred_region
      %60 = vst [vmem:[#allocation2] sm:$0xff] 0.0
      %61 = vst [vmem:[#allocation2 + $0x8] sm:$0xff] 0.0
    $region29: #{tpu_custom_call.1} parent=1 // pred_fallthru
      _
    %v62 = vld [vmem:[#allocation3] sm:$0xff]
    %v63 = vld [vmem:[#allocation3 + $0x8] sm:$0xff]
    %v64 = vld [vmem:[#allocation6] sm:$0xff]
    %v65 = vld [vmem:[#allocation6 + $0x8] sm:$0xff]
    %v66 = vld [vmem:[#allocation6 + $0x10] sm:$0xff]
    %v67 = vld [vmem:[#allocation6 + $0x18] sm:$0xff]
    %68 = vmatprep.subr.mxu0 0.0
    %69 = vmatpush1.xpose.msra.mxu0 0.0
    %70 = vmatprep.subr.mxu0 0.0
    %71 = vmatpush1.xpose.msra.mxu0 0.0
    %72 = vmatprep.subr.mxu0 0.0
    %73 = vmatpush1.xpose.msra.mxu0 0.0
    %74 = vmatprep.subr.mxu0 0.0
    %75 = vmatpush1.xpose.msra.mxu0 0.0
    %76 = vmatprep.subr.mxu0 0.0
    %77 = vmatpush1.xpose.msra.mxu0 0.0
    %78 = vmatprep.subr.mxu0 0.0
    %79 = vmatpush1.xpose.msra.mxu0 0.0
    %80 = vmatprep.subr.mxu0 0.0
    %81 = vmatpush1.xpose.msra.mxu0 0.0
    %82 = vmatprep.subr.mxu0 0.0
    %83 = vmatpush1.xpose.msra.mxu0 0.0
    %84 = vmatprep.subr.mxu0 0.0
    %85 = vmatpush1.xpose.msra.mxu0 0.0
    %86 = vmatprep.subr.mxu0 0.0
    %87 = vmatpush1.xpose.msra.mxu0 0.0
    %88 = vmatprep.subr.mxu0 0.0
    %89 = vmatpush1.xpose.msra.mxu0 0.0
    %90 = vmatprep.subr.mxu0 0.0
    %91 = vmatpush1.xpose.msra.mxu0 0.0
    %92 = vmatprep.subr.mxu0 0.0
    %93 = vmatpush1.xpose.msra.mxu0 %v67
    %94 = vmatprep.subr.mxu0 0.0
    %95 = vmatpush1.xpose.msra.mxu0 %v66
    %96 = vmatprep.subr.mxu0 0.0
    %97 = vmatpush1.xpose.msra.mxu0 %v65
    %98 = vmatprep.subr.mxu0 0.0
    %99 = vmatpush1.xpose.msra.mxu0 %v64
    %100 = vmatprep.subr.mxu0 0.0
    %101 = vmatpush2.xpose.msra.mxu0 0.0
    %102 = vmatprep.subr.mxu0 0.0
    %103 = vmatpush2.xpose.msra.mxu0 0.0
    %104 = vmatprep.subr.mxu0 0.0
    %105 = vmatpush2.xpose.msra.mxu0 0.0
    %106 = vmatprep.subr.mxu0 0.0
    %107 = vmatpush2.xpose.msra.mxu0 0.0
    %108 = vmatprep.subr.mxu0 0.0
    %109 = vmatpush2.xpose.msra.mxu0 0.0
    %110 = vmatprep.subr.mxu0 0.0
    %111 = vmatpush2.xpose.msra.mxu0 0.0
    %112 = vmatprep.subr.mxu0 0.0
    %113 = vmatpush2.xpose.msra.mxu0 0.0
    %114 = vmatprep.subr.mxu0 0.0
    %115 = vmatpush2.xpose.msra.mxu0 0.0
    %116 = vmatprep.subr.mxu0 0.0
    %117 = vmatpush2.xpose.msra.mxu0 0.0
    %118 = vmatprep.subr.mxu0 0.0
    %119 = vmatpush2.xpose.msra.mxu0 0.0
    %120 = vmatprep.subr.mxu0 0.0
    %121 = vmatpush2.xpose.msra.mxu0 0.0
    %122 = vmatprep.subr.mxu0 0.0
    %123 = vmatpush2.xpose.msra.mxu0 0.0
    %124 = vmatprep.subr.mxu0 0.0
    %125 = vmatpush2.xpose.msra.mxu0 0.0
    %126 = vmatprep.subr.mxu0 0.0
    %127 = vmatpush2.xpose.msra.mxu0 0.0
    %128 = vmatprep.subr.mxu0 0.0
    %129 = vmatpush2.xpose.msra.mxu0 0.0
    %130 = vmatprep.subr.mxu0 0.0
    %131 = vmatpush2.xpose.msra.mxu0 0.0
    %132 = vmatprep.mubr.f32.mxu0 0.0
    %133 = vmatmul.mubr.f32.gmra.mxu0 %v62
    %v134 = vpop.f32.mrf.mxu0
    %v135 = vadd.f32 0.0, %v134
    %v136 = vpop.f32.mrf.mxu0
    %137 = vmatprep.mubr.f32.mxu0 0.0
    %138 = vmatmul.mubr.f32.gmra.mxu0 %v63
    %v139 = vpop.f32.mrf.mxu0
    %v140 = vadd.f32 0.0, %v139
    %v141 = vpop.f32.mrf.mxu0
    %142 = vdwg.mxu0
    %v143 = vmul.f32 %v135, 1.442695
    %v144 = vpow.pop %v143
    %v145 = vmul.f32 %v140, 1.442695
    %v146 = vpow.pop %v145
    %v147 = vld [vmem:[#allocation2] sm:$0xff]
    %v148 = vld [vmem:[#allocation2 + $0x8] sm:$0xff]
    %v149 = vld [vmem:[#allocation8] sm:$0xff]
    %v150 = vld [vmem:[#allocation8 + $0x8] sm:$0xff]
    %v151 = vld [vmem:[#allocation8 + $0x10] sm:$0xff]
    %v152 = vld [vmem:[#allocation8 + $0x18] sm:$0xff]
    %vm153 = vcmask 261120
    %v155 = vsel %vm153, %v144, 0
    %v158 = vsel %vm153, %v146, 0
    %160 = vmatprep.subr.mxu0 0.0
    %161 = vmatpush1.msra.mxu0 0.0
    %162 = vmatprep.subr.mxu0 0.0
    %163 = vmatpush1.msra.mxu0 0.0
    %164 = vmatprep.subr.mxu0 0.0
    %165 = vmatpush1.msra.mxu0 0.0
    %166 = vmatprep.subr.mxu0 0.0
    %167 = vmatpush1.msra.mxu0 0.0
    %168 = vmatprep.subr.mxu0 0.0
    %169 = vmatpush1.msra.mxu0 0.0
    %170 = vmatprep.subr.mxu0 0.0
    %171 = vmatpush1.msra.mxu0 0.0
    %172 = vmatprep.subr.mxu0 0.0
    %173 = vmatpush1.msra.mxu0 0.0
    %174 = vmatprep.subr.mxu0 0.0
    %175 = vmatpush1.msra.mxu0 0.0
    %176 = vmatprep.subr.mxu0 0.0
    %177 = vmatpush1.msra.mxu0 0.0
    %178 = vmatprep.subr.mxu0 0.0
    %179 = vmatpush1.msra.mxu0 0.0
    %180 = vmatprep.subr.mxu0 0.0
    %181 = vmatpush1.msra.mxu0 0.0
    %182 = vmatprep.subr.mxu0 0.0
    %183 = vmatpush1.msra.mxu0 0.0
    %184 = vmatprep.subr.mxu0 0.0
    %185 = vmatpush1.msra.mxu0 %v152
    %186 = vmatprep.subr.mxu0 0.0
    %187 = vmatpush1.msra.mxu0 %v151
    %188 = vmatprep.subr.mxu0 0.0
    %189 = vmatpush1.msra.mxu0 %v150
    %190 = vmatprep.subr.mxu0 0.0
    %191 = vmatpush1.msra.mxu0 %v149
    %192 = vmatprep.subr.mxu0 0.0
    %193 = vmatpush2.msra.mxu0 0.0
    %194 = vmatprep.subr.mxu0 0.0
    %195 = vmatpush2.msra.mxu0 0.0
    %196 = vmatprep.subr.mxu0 0.0
    %197 = vmatpush2.msra.mxu0 0.0
    %198 = vmatprep.subr.mxu0 0.0
    %199 = vmatpush2.msra.mxu0 0.0
    %200 = vmatprep.subr.mxu0 0.0
    %201 = vmatpush2.msra.mxu0 0.0
    %202 = vmatprep.subr.mxu0 0.0
    %203 = vmatpush2.msra.mxu0 0.0
    %204 = vmatprep.subr.mxu0 0.0
    %205 = vmatpush2.msra.mxu0 0.0
    %206 = vmatprep.subr.mxu0 0.0
    %207 = vmatpush2.msra.mxu0 0.0
    %208 = vmatprep.subr.mxu0 0.0
    %209 = vmatpush2.msra.mxu0 0.0
    %210 = vmatprep.subr.mxu0 0.0
    %211 = vmatpush2.msra.mxu0 0.0
    %212 = vmatprep.subr.mxu0 0.0
    %213 = vmatpush2.msra.mxu0 0.0
    %214 = vmatprep.subr.mxu0 0.0
    %215 = vmatpush2.msra.mxu0 0.0
    %216 = vmatprep.subr.mxu0 0.0
    %217 = vmatpush2.msra.mxu0 0.0
    %218 = vmatprep.subr.mxu0 0.0
    %219 = vmatpush2.msra.mxu0 0.0
    %220 = vmatprep.subr.mxu0 0.0
    %221 = vmatpush2.msra.mxu0 0.0
    %222 = vmatprep.subr.mxu0 0.0
    %223 = vmatpush2.msra.mxu0 0.0
    %224 = vmatprep.mubr.f32.mxu0 0.0
    %225 = vmatmul.mubr.f32.gmra.mxu0 %v155
    %v226 = vpop.f32.mrf.mxu0
    %v227 = vadd.f32 0.0, %v226
    %v228 = vpop.f32.mrf.mxu0
    %229 = vmatprep.mubr.f32.mxu0 0.0
    %230 = vmatmul.mubr.f32.gmra.mxu0 %v158
    %v231 = vpop.f32.mrf.mxu0
    %v232 = vadd.f32 0.0, %v231
    %v233 = vpop.f32.mrf.mxu0
    %234 = vdwg.mxu0
    %v235 = vadd.f32 %v147, %v227
    %v236 = vadd.f32 %v148, %v232
    %237 = vst [vmem:[#allocation2] sm:$0xff] %v235
    %238 = vst [vmem:[#allocation2 + $0x8] sm:$0xff] %v236
    // Predicated region
    $region30: #{tpu_custom_call.1} parent=1 // pred_check
      %p239 = pneg %p56
    $region31: #{tpu_custom_call.1} parent=1 // pred_check_branch
      %241 = sbr.rel (%p239) target = $region33
    $region32: #{tpu_custom_call.1} parent=1 // pred_region
      %v242 = vld [vmem:[#allocation2] sm:$0xff]
      %v243 = vld [vmem:[#allocation2 + $0x8] sm:$0xff]
      %244 = vst [vmem:[#allocation9] sm:$0xff] %v242
      %245 = vst [vmem:[#allocation9 + $0x8] sm:$0xff] %v243
    $region33: #{tpu_custom_call.1} parent=1 // pred_fallthru
      _
    // Predicated region
    $region34: #{tpu_custom_call.1} parent=1 // pred_check
      _
    $region35: #{tpu_custom_call.1} parent=1 // pred_check_branch
      %247 = sbr.rel (0) target = $region37
    $region36: #{tpu_custom_call.1} parent=1 // pred_region
      %s249 = ssub.s32 256, 256
      %250 = vsyncadd [#allocation5], %s249
      %s251 = sshll.u32 [#allocation9], 4
      %s252 = int_to_ptr.vmem [resolvable:$true] %s251
      %257 = dma.vmem_to_hbm [thread:$0]  %s252, 256, %s3, [#allocation5], 128, 128, 8
    $region37: #{tpu_custom_call.1} parent=1 // pred_fallthru
      _
    // Predicated region
    $region38: #{tpu_custom_call.1} parent=1 // pred_check
      _
    $region39: #{tpu_custom_call.1} parent=1 // pred_check_branch
      %259 = sbr.rel (0) target = $region41
    $region40: #{tpu_custom_call.1} parent=1 // pred_region
      %260 = dma.done [#allocation5], 256
    $region41: #{tpu_custom_call.1} parent=1 // pred_fallthru
      _
    %261 = vsyncpa [#allocation4], 1
    %262 = vsyncpa [#allocation7], 1
    %263 = vsyncpa [#allocation5], 1

</llo_original>
